<compile_context>
chip_gen: v7x
topology: tpu7x:2x2x1
jax: 0.10.0
libtpu: 0.0.40
codegen_flags: <defaults>
</compile_context>

<pallas_src>
import functools

import jax
import jax.numpy as jnp
import numpy as np
from jax.experimental import pallas as pl
from jax.experimental.pallas import tpu as pltpu

LANE = 128
SUB = 8


def _ru(n, m):
    return ((n + m - 1) // m) * m


def _pad2(a, rows, cols):
    return jnp.pad(a, ((0, rows - a.shape[0]), (0, cols - a.shape[1])))


# ----------------------------- Pallas kernel --------------------------------
def mlp4_kernel(x1_ref, x2_ref, w3_ref, w4_ref, w5_ref, w6_ref, bias_ref,
                o_ref, flag_ref, *, out_dim):
    x1 = x1_ref[...]
    x2 = x2_ref[...]

    # Fused NaN guard (mirrors torch's np.isnan(np.sum(x)) on the concatenated input):
    # one scalar per batch tile, broadcast into a tiny (8,128) flag block.
    s = jnp.sum(x1) + jnp.sum(x2)
    flag_ref[...] = jnp.broadcast_to(jnp.isnan(s).astype(jnp.float32), flag_ref.shape)

    # layer3: the concat is done in VMEM and fed to one K=256 dot (full MXU depth on
    # v6e/v7x); accumulate f32, bias/tanh f32.
    xb = jnp.concatenate([x1, x2], axis=1).astype(jnp.bfloat16)
    h3 = jnp.tanh(
        jnp.dot(xb, w3_ref[...], preferred_element_type=jnp.float32)
        + bias_ref[0:1, :]
    )
    # layer4: Linear(128->64)+Tanh (out padded to 128 lanes; padded cols stay tanh(0)=0)
    h4 = jnp.tanh(
        jnp.dot(h3.astype(jnp.bfloat16), w4_ref[...], preferred_element_type=jnp.float32)
        + bias_ref[1:2, :]
    )
    # layer5: Linear(64->32)+Tanh (padded)
    h5 = jnp.tanh(
        jnp.dot(h4.astype(jnp.bfloat16), w5_ref[...], preferred_element_type=jnp.float32)
        + bias_ref[2:3, :]
    )
    # layer6: Linear(32->2), no activation; store only the real out_dim columns
    # (no 128-lane-padded writeback).
    h6 = (
        jnp.dot(h5.astype(jnp.bfloat16), w6_ref[...], preferred_element_type=jnp.float32)
        + bias_ref[3:4, :]
    )
    o_ref[...] = h6[:, :out_dim].astype(o_ref.dtype)


# ----------------------------- Parameter preparation -------------------------
def prepare_params(params):
    """One-time prep: pad hidden/out dims to 128 lanes, cast weights to bf16, pack the
    four biases into a single (8,128) f32 operand. tanh(0)=0 keeps zero padding exact."""
    (w3, b3), (w4, b4), (w5, b5), (w6, b6) = params          # weights are [in, out]
    n2, n3 = w3.shape
    n4, n5, nout = w4.shape[1], w5.shape[1], w6.shape[1]
    P3, P4, P5, Pout = (_ru(n, LANE) for n in (n3, n4, n5, nout))
    assert max(P3, P4, P5, Pout) <= LANE, "packed-bias layout assumes <=128 output lanes/layer"

    w3p = _pad2(w3, n2, P3).astype(jnp.bfloat16)
    w4p = _pad2(w4, P3, P4).astype(jnp.bfloat16)
    w5p = _pad2(w5, P4, P5).astype(jnp.bfloat16)
    w6p = _pad2(w6, P5, Pout).astype(jnp.bfloat16)

    biases = jnp.zeros((SUB, LANE), jnp.float32)
    biases = biases.at[0, :n3].set(b3.astype(jnp.float32))
    biases = biases.at[1, :n4].set(b4.astype(jnp.float32))
    biases = biases.at[2, :n5].set(b5.astype(jnp.float32))
    biases = biases.at[3, :nout].set(b6.astype(jnp.float32))
    return (w3p, w4p, w5p, w6p, biases)


# ----------------------------- Forward wrapper --------------------------------
def server_leakyrelunet_4_forward(x1, x2, prepared, out_dim, *, check_nan=True):
    w3, w4, w5, w6, biases = prepared
    d1, d2 = x1.shape[1], x2.shape[1]
    assert w3.shape[0] == d1 + d2
    P3, P4, P5, Pout = w3.shape[1], w4.shape[1], w5.shape[1], w6.shape[1]

    B = x1.shape[0]
    B8 = _ru(max(B, 1), SUB)
    if B8 >= 256:
        # Split into >=2 batch tiles so the "parallel" axis can shard across v7x's 2 TCs;
        # cap at 1024 rows/tile (total VMEM footprint stays ~3-4 MiB, fine on all gens).
        block_b = min(1024, _ru((B8 + 1) // 2, SUB))
    else:
        block_b = B8
    B_pad = _ru(B8, block_b)
    if B_pad != B:
        x1 = jnp.pad(x1, ((0, B_pad - B), (0, 0)))
        x2 = jnp.pad(x2, ((0, B_pad - B), (0, 0)))
    num_tiles = B_pad // block_b
    grid = (num_tiles,)

    kernel = functools.partial(mlp4_kernel, out_dim=out_dim)

    flops = 2 * B_pad * ((d1 + d2) * P3 + P3 * P4 + P4 * P5 + P5 * Pout)
    transcendentals = B_pad * (P3 + P4 + P5)
    bytes_accessed = (
        B_pad * (d1 + d2) * 4                                          # f32 inputs
        + 2 * ((d1 + d2) * P3 + P3 * P4 + P4 * P5 + P5 * Pout)          # bf16 weights
        + SUB * LANE * 4                                                # packed biases
        + B_pad * out_dim * 4                                           # f32 output (unpadded)
        + num_tiles * SUB * LANE * 4                                    # NaN flag blocks
    )

    out, nan_flags = pl.pallas_call(
        kernel,
        out_shape=(
            jax.ShapeDtypeStruct((B_pad, out_dim), jnp.float32),
            jax.ShapeDtypeStruct((num_tiles * SUB, LANE), jnp.float32),
        ),
        grid=grid,
        in_specs=[
            pl.BlockSpec((block_b, d1), lambda i: (i, 0)),      # x1 tile
            pl.BlockSpec((block_b, d2), lambda i: (i, 0)),      # x2 tile
            pl.BlockSpec((d1 + d2, P3), lambda i: (0, 0)),      # W3 (VMEM-resident)
            pl.BlockSpec((P3, P4), lambda i: (0, 0)),           # W4
            pl.BlockSpec((P4, P5), lambda i: (0, 0)),           # W5
            pl.BlockSpec((P5, Pout), lambda i: (0, 0)),         # W6
            pl.BlockSpec((SUB, LANE), lambda i: (0, 0)),        # packed biases
        ],
        out_specs=(
            pl.BlockSpec((block_b, out_dim), lambda i: (i, 0)),  # unpadded output
            pl.BlockSpec((SUB, LANE), lambda i: (i, 0)),         # per-tile NaN flag
        ),
        compiler_params=pltpu.CompilerParams(dimension_semantics=("parallel",)),
        cost_estimate=pl.CostEstimate(
            flops=int(flops),
            transcendentals=int(transcendentals),
            bytes_accessed=int(bytes_accessed),
        ),
    )(x1, x2, w3, w4, w5, w6, biases)

    if check_nan:
        # TODO(synk): mirrors the torch host-side ValueError guard; forces a host sync on
        # the tiny flag array only (not jit-compatible with check_nan=True).
        if bool(jnp.any(nan_flags != 0.0)):
            raise ValueError()

    return out if B_pad == B else out[:B]


# ----------------------------- Parameter init ---------------------------------
def init_linear(key, fan_in, fan_out):
    """PyTorch default init: U(-1/sqrt(fan_in), 1/sqrt(fan_in)); weight stored [in, out]."""
    kw, kb = jax.random.split(key)
    bound = 1.0 / np.sqrt(fan_in)
    w = jax.random.uniform(kw, (fan_in, fan_out), jnp.float32, -bound, bound)
    b = jax.random.uniform(kb, (fan_out,), jnp.float32, -bound, bound)
    return w, b


def _reference(params, x1, x2):
    (w3, b3), (w4, b4), (w5, b5), (w6, b6) = params
    x = jnp.concatenate([x1, x2], axis=1)
    h3 = jnp.tanh(x @ w3 + b3)
    h4 = jnp.tanh(h3 @ w4 + b4)
    h5 = jnp.tanh(h4 @ w5 + b5)
    return h5 @ w6 + b6


# ----------------------------- Main --------------------------------------------
if __name__ == "__main__":
    key = jax.random.PRNGKey(0)
    kx1, kx2, k3, k4, k5, k6, kb1, kb2 = jax.random.split(key, 8)

    n_hidden_2, n_hidden_3, n_hidden_4, n_hidden_5, out_dim = 256, 128, 64, 32, 2
    d1 = 128                      # split of the concatenated 256-dim input
    d2 = n_hidden_2 - d1

    params = (
        init_linear(k3, n_hidden_2, n_hidden_3),
        init_linear(k4, n_hidden_3, n_hidden_4),
        init_linear(k5, n_hidden_4, n_hidden_5),
        init_linear(k6, n_hidden_5, out_dim),
    )
    prepared = prepare_params(params)

    # --- small batch (single tile) ---
    B = 8
    x1 = jax.random.normal(kx1, (B, d1), jnp.float32)
    x2 = jax.random.normal(kx2, (B, d2), jnp.float32)
    out = jax.block_until_ready(server_leakyrelunet_4_forward(x1, x2, prepared, out_dim))
    ref = _reference(params, x1, x2)
    np.testing.assert_allclose(np.asarray(out), np.asarray(ref), rtol=2e-2, atol=2e-2)
    assert out.shape == (B, out_dim)
    assert not np.isnan(np.sum(np.asarray(out)))

    # --- larger batch: exercises multi-tile grid + batch padding ---
    B2 = 260
    x1b = jax.random.normal(kb1, (B2, d1), jnp.float32)
    x2b = jax.random.normal(kb2, (B2, d2), jnp.float32)
    out2 = jax.block_until_ready(server_leakyrelunet_4_forward(x1b, x2b, prepared, out_dim))
    ref2 = _reference(params, x1b, x2b)
    np.testing.assert_allclose(np.asarray(out2), np.asarray(ref2), rtol=2e-2, atol=2e-2)
    assert out2.shape == (B2, out_dim)

    # --- fused NaN guard fires like the torch module's ValueError ---
    x1_bad = x1.at[0, 0].set(jnp.nan)
    fired = False
    try:
        server_leakyrelunet_4_forward(x1_bad, x2, prepared, out_dim)
    except ValueError:
        fired = True
    assert fired, "in-kernel NaN guard did not fire"

    print("KERNEL_OK")
</pallas_src>

<mosaic_0001>
module attributes {stable_mosaic.version = 11 : i64} {
  func.func @mlp4_kernel(%arg0: i32, %arg1: memref<8x128xf32, #tpu.memory_space<vmem>>, %arg2: memref<8x128xf32, #tpu.memory_space<vmem>>, %arg3: memref<256x128xbf16, #tpu.memory_space<vmem>>, %arg4: memref<128x128xbf16, #tpu.memory_space<vmem>>, %arg5: memref<128x128xbf16, #tpu.memory_space<vmem>>, %arg6: memref<128x128xbf16, #tpu.memory_space<vmem>>, %arg7: memref<8x128xf32, #tpu.memory_space<vmem>>, %arg8: memref<8x2xf32, #tpu.memory_space<vmem>>, %arg9: memref<8x128xf32, #tpu.memory_space<vmem>>) attributes {dimension_semantics = [#tpu.dimension_semantics<parallel>], iteration_bounds = array<i64: 1>, scalar_prefetch = 0 : i64, scratch_operands = 0 : i64, tpu.core_type = #tpu.core_type<tc>, window_params = [{transform_indices = @transform_0, window_bounds = array<i64: 8, 128>}, {transform_indices = @transform_1, window_bounds = array<i64: 8, 128>}, {pipeline_mode = #tpu.pipeline_mode<synchronous>, transform_indices = @transform_2, window_bounds = array<i64: 256, 128>}, {pipeline_mode = #tpu.pipeline_mode<synchronous>, transform_indices = @transform_3, window_bounds = array<i64: 128, 128>}, {pipeline_mode = #tpu.pipeline_mode<synchronous>, transform_indices = @transform_4, window_bounds = array<i64: 128, 128>}, {pipeline_mode = #tpu.pipeline_mode<synchronous>, transform_indices = @transform_5, window_bounds = array<i64: 128, 128>}, {pipeline_mode = #tpu.pipeline_mode<synchronous>, transform_indices = @transform_6, window_bounds = array<i64: 8, 128>}, {transform_indices = @transform_7, window_bounds = array<i64: 8, 2>}, {transform_indices = @transform_8, window_bounds = array<i64: 8, 128>}]} {
    %c0 = arith.constant 0 : index
    %c0_0 = arith.constant 0 : index
    %0 = vector.load %arg1[%c0, %c0_0] : memref<8x128xf32, #tpu.memory_space<vmem>>, vector<8x128xf32>
    %c0_1 = arith.constant 0 : index
    %c0_2 = arith.constant 0 : index
    %1 = vector.load %arg2[%c0_1, %c0_2] : memref<8x128xf32, #tpu.memory_space<vmem>>, vector<8x128xf32>
    %2 = vector.shape_cast %0 : vector<8x128xf32> to vector<1x8x128xf32>
    %cst = arith.constant dense<0.000000e+00> : vector<1xf32>
    %3 = vector.multi_reduction <add>, %2, %cst [1, 2] : vector<1x8x128xf32> to vector<1xf32>
    %4 = vector.shape_cast %3 : vector<1xf32> to vector<1x1x1xf32>
    %5 = vector.extract %4[0, 0, 0] : f32 from vector<1x1x1xf32>
    %6 = vector.shape_cast %1 : vector<8x128xf32> to vector<1x8x128xf32>
    %cst_3 = arith.constant dense<0.000000e+00> : vector<1xf32>
    %7 = vector.multi_reduction <add>, %6, %cst_3 [1, 2] : vector<1x8x128xf32> to vector<1xf32>
    %8 = vector.shape_cast %7 : vector<1xf32> to vector<1x1x1xf32>
    %9 = vector.extract %8[0, 0, 0] : f32 from vector<1x1x1xf32>
    %10 = arith.addf %5, %9 : f32
    %11 = arith.cmpf one, %10, %10 : f32
    %12 = arith.extui %11 : i1 to i32
    %13 = arith.sitofp %12 : i32 to f32
    %14 = vector.broadcast %13 : f32 to vector<8x128xf32>
    %c0_4 = arith.constant 0 : index
    %c0_5 = arith.constant 0 : index
    %15 = vector.load %arg9[%c0_4, %c0_5] : memref<8x128xf32, #tpu.memory_space<vmem>>, vector<8x128xf32>
    tpu.vector_store %arg9[%c0_4, %c0_5], %14 {strides = array<i32>} : memref<8x128xf32, #tpu.memory_space<vmem>>, vector<8x128xf32>,
    %16 = tpu.concatenate %0, %1 in 1 : vector<8x128xf32>, vector<8x128xf32> -> vector<8x256xf32>
    %17 = arith.truncf %16 : vector<8x256xf32> to vector<8x256xbf16>
    %c0_6 = arith.constant 0 : index
    %c0_7 = arith.constant 0 : index
    %18 = vector.load %arg3[%c0_6, %c0_7] : memref<256x128xbf16, #tpu.memory_space<vmem>>, vector<256x128xbf16>
    %cst_8 = arith.constant dense<0.000000e+00> : vector<8x128xf32>
    %19 = tpu.matmul %17, %18, %cst_8 {dimension_numbers = #tpu.dot_dimension_numbers<[1], [0], [0], [1], [0, 0, 1, 1], [], []>} : vector<8x256xbf16>, vector<256x128xbf16>, vector<8x128xf32> -> vector<8x128xf32>
    %c0_9 = arith.constant 0 : index
    %c0_10 = arith.constant 0 : index
    %20 = vector.load %arg7[%c0_9, %c0_10] : memref<8x128xf32, #tpu.memory_space<vmem>>, vector<1x128xf32>
    %21 = vector.broadcast %20 : vector<1x128xf32> to vector<8x128xf32>
    %22 = arith.addf %19, %21 : vector<8x128xf32>
    %23 = math.tanh %22 : vector<8x128xf32>
    %24 = arith.truncf %23 : vector<8x128xf32> to vector<8x128xbf16>
    %c0_11 = arith.constant 0 : index
    %c0_12 = arith.constant 0 : index
    %25 = vector.load %arg4[%c0_11, %c0_12] : memref<128x128xbf16, #tpu.memory_space<vmem>>, vector<128x128xbf16>
    %cst_13 = arith.constant dense<0.000000e+00> : vector<8x128xf32>
    %26 = tpu.matmul %24, %25, %cst_13 {dimension_numbers = #tpu.dot_dimension_numbers<[1], [0], [0], [1], [0, 0, 1, 1], [], []>} : vector<8x128xbf16>, vector<128x128xbf16>, vector<8x128xf32> -> vector<8x128xf32>
    %c1 = arith.constant 1 : index
    %c0_14 = arith.constant 0 : index
    %27 = vector.load %arg7[%c1, %c0_14] : memref<8x128xf32, #tpu.memory_space<vmem>>, vector<1x128xf32>
    %28 = vector.broadcast %27 : vector<1x128xf32> to vector<8x128xf32>
    %29 = arith.addf %26, %28 : vector<8x128xf32>
    %30 = math.tanh %29 : vector<8x128xf32>
    %31 = arith.truncf %30 : vector<8x128xf32> to vector<8x128xbf16>
    %c0_15 = arith.constant 0 : index
    %c0_16 = arith.constant 0 : index
    %32 = vector.load %arg5[%c0_15, %c0_16] : memref<128x128xbf16, #tpu.memory_space<vmem>>, vector<128x128xbf16>
    %cst_17 = arith.constant dense<0.000000e+00> : vector<8x128xf32>
    %33 = tpu.matmul %31, %32, %cst_17 {dimension_numbers = #tpu.dot_dimension_numbers<[1], [0], [0], [1], [0, 0, 1, 1], [], []>} : vector<8x128xbf16>, vector<128x128xbf16>, vector<8x128xf32> -> vector<8x128xf32>
    %c2 = arith.constant 2 : index
    %c0_18 = arith.constant 0 : index
    %34 = vector.load %arg7[%c2, %c0_18] : memref<8x128xf32, #tpu.memory_space<vmem>>, vector<1x128xf32>
    %35 = vector.broadcast %34 : vector<1x128xf32> to vector<8x128xf32>
    %36 = arith.addf %33, %35 : vector<8x128xf32>
    %37 = math.tanh %36 : vector<8x128xf32>
    %38 = arith.truncf %37 : vector<8x128xf32> to vector<8x128xbf16>
    %c0_19 = arith.constant 0 : index
    %c0_20 = arith.constant 0 : index
    %39 = vector.load %arg6[%c0_19, %c0_20] : memref<128x128xbf16, #tpu.memory_space<vmem>>, vector<128x128xbf16>
    %cst_21 = arith.constant dense<0.000000e+00> : vector<8x128xf32>
    %40 = tpu.matmul %38, %39, %cst_21 {dimension_numbers = #tpu.dot_dimension_numbers<[1], [0], [0], [1], [0, 0, 1, 1], [], []>} : vector<8x128xbf16>, vector<128x128xbf16>, vector<8x128xf32> -> vector<8x128xf32>
    %c3 = arith.constant 3 : index
    %c0_22 = arith.constant 0 : index
    %41 = vector.load %arg7[%c3, %c0_22] : memref<8x128xf32, #tpu.memory_space<vmem>>, vector<1x128xf32>
    %42 = vector.broadcast %41 : vector<1x128xf32> to vector<8x128xf32>
    %43 = arith.addf %40, %42 : vector<8x128xf32>
    %44 = vector.extract_strided_slice %43 {offsets = [0, 0], sizes = [8, 2], strides = [1, 1]} : vector<8x128xf32> to vector<8x2xf32>
    %c0_23 = arith.constant 0 : index
    %c0_24 = arith.constant 0 : index
    %45 = vector.load %arg8[%c0_23, %c0_24] : memref<8x2xf32, #tpu.memory_space<vmem>>, vector<8x2xf32>
    tpu.vector_store %arg8[%c0_23, %c0_24], %44 {strides = array<i32>} : memref<8x2xf32, #tpu.memory_space<vmem>>, vector<8x2xf32>,
    return
  }
  func.func @transform_0(%arg0: i32) -> (i32, i32) {
    %c0_i32 = arith.constant 0 : i32
    %c0_i32_0 = arith.constant 0 : i32
    return %arg0, %c0_i32 : i32, i32
  }
  func.func @transform_1(%arg0: i32) -> (i32, i32) {
    %c0_i32 = arith.constant 0 : i32
    %c0_i32_0 = arith.constant 0 : i32
    return %arg0, %c0_i32 : i32, i32
  }
  func.func @transform_2(%arg0: i32) -> (i32, i32) {
    %c0_i32 = arith.constant 0 : i32
    %c0_i32_0 = arith.constant 0 : i32
    %c0_i32_1 = arith.constant 0 : i32
    return %c0_i32, %c0_i32_0 : i32, i32
  }
  func.func @transform_3(%arg0: i32) -> (i32, i32) {
    %c0_i32 = arith.constant 0 : i32
    %c0_i32_0 = arith.constant 0 : i32
    %c0_i32_1 = arith.constant 0 : i32
    return %c0_i32, %c0_i32_0 : i32, i32
  }
  func.func @transform_4(%arg0: i32) -> (i32, i32) {
    %c0_i32 = arith.constant 0 : i32
    %c0_i32_0 = arith.constant 0 : i32
    %c0_i32_1 = arith.constant 0 : i32
    return %c0_i32, %c0_i32_0 : i32, i32
  }
  func.func @transform_5(%arg0: i32) -> (i32, i32) {
    %c0_i32 = arith.constant 0 : i32
    %c0_i32_0 = arith.constant 0 : i32
    %c0_i32_1 = arith.constant 0 : i32
    return %c0_i32, %c0_i32_0 : i32, i32
  }
  func.func @transform_6(%arg0: i32) -> (i32, i32) {
    %c0_i32 = arith.constant 0 : i32
    %c0_i32_0 = arith.constant 0 : i32
    %c0_i32_1 = arith.constant 0 : i32
    return %c0_i32, %c0_i32_0 : i32, i32
  }
  func.func @transform_7(%arg0: i32) -> (i32, i32) {
    %c0_i32 = arith.constant 0 : i32
    %c0_i32_0 = arith.constant 0 : i32
    return %arg0, %c0_i32 : i32, i32
  }
  func.func @transform_8(%arg0: i32) -> (i32, i32) {
    %c0_i32 = arith.constant 0 : i32
    %c0_i32_0 = arith.constant 0 : i32
    return %arg0, %c0_i32 : i32, i32
  }
}

</mosaic_0001>

<llo_original>
// kernel: tpu_custom_call.1
$region0: #{tpu_custom_call.1}
  #allocation0 [shape = 'u32[]', space=smem, size = 0x4, offset = 0x4, fixed_abs, tag = 'smem constant byte address 0x4 - core index']
  #allocation1 [shape = 'u32[144,128]{1,0:T(1,128)}', space=vmem, size = 0x12000, scoped, tag = 'internal scratch']
  %s0 = inlined_call_operand.hbm [shape: f32[8,128], index: 0, kind: input, shape index: {}]
  %s1 = inlined_call_operand.hbm [shape: f32[8,128], index: 1, kind: input, shape index: {}]
  %s2 = inlined_call_operand.hbm [shape: bf16[256,128], index: 2, kind: input, shape index: {}]
  %s3 = inlined_call_operand.hbm [shape: bf16[128,128], index: 3, kind: input, shape index: {}]
  %s4 = inlined_call_operand.hbm [shape: bf16[128,128], index: 4, kind: input, shape index: {}]
  %s5 = inlined_call_operand.hbm [shape: bf16[128,128], index: 5, kind: input, shape index: {}]
  %s6 = inlined_call_operand.vmem [shape: f32[8,128], index: 6, kind: input, shape index: {}]
  %s7 = inlined_call_operand.vmem [shape: f32[8,2], index: 7, kind: output, shape index: {0}]
  %s8 = inlined_call_operand.hbm [shape: f32[8,128], index: 8, kind: output, shape index: {1}]
  %9 = xla_tuple %s7, %s8
  %s10 = sld [smem:[#allocation0]]
  $region70: #{tpu_custom_call.1} parent=0
    _
  %s12 = ssub.s32 1, %s10
  %s13 = scalar_select 0, %s12, %s10
  $region1: #{tpu_custom_call.1} parent=0
    #allocation2 [shape = 'u8[4096]{0}', space=vmem, size = 0x1000, scoped, tag = 'input window, operand 0, single buffered']
    #allocation3 [shape = 's32[1]{0}', space=sflag, size = 0x4, scoped, tag = 'scoped memory for tpu_custom_call.1']
    #allocation4 [shape = 's32[1]{0}', space=sflag, size = 0x4, scoped, tag = 'scoped memory for tpu_custom_call.1']
    #allocation5 [shape = 'u8[4096]{0}', space=vmem, size = 0x1000, scoped, tag = 'input window, operand 1, single buffered']
    #allocation6 [shape = 's32[1]{0}', space=sflag, size = 0x4, scoped, tag = 'scoped memory for tpu_custom_call.1']
    #allocation7 [shape = 'u8[65536]{0}', space=vmem, size = 0x10000, scoped, tag = 'input window, operand 2, single buffered']
    #allocation8 [shape = 'u8[32768]{0}', space=vmem, size = 0x8000, scoped, tag = 'input window, operand 3, single buffered']
    #allocation9 [shape = 's32[1]{0}', space=sflag, size = 0x4, scoped, tag = 'scoped memory for tpu_custom_call.1']
    #allocation10 [shape = 'u8[32768]{0}', space=vmem, size = 0x8000, scoped, tag = 'input window, operand 4, single buffered']
    #allocation11 [shape = 'u8[32768]{0}', space=vmem, size = 0x8000, scoped, tag = 'input window, operand 5, single buffered']
    #allocation12 [shape = 's32[1]{0}', space=sflag, size = 0x4, scoped, tag = 'scoped memory for tpu_custom_call.1']
    #allocation13 [shape = 'u8[4096]{0}', space=vmem, size = 0x1000, scoped, tag = 'output window, operand 1, single buffered']
    %14 = vsyncpa [#allocation3], 0
    %15 = vsyncpa [#allocation6], 0
    %16 = vsyncpa [#allocation9], 0
    %17 = vsyncpa [#allocation12], 0
    %18 = vsyncpa [#allocation4], 0
    // Predicated region
    $region2: #{tpu_custom_call.1} parent=1 // pred_check
      _
    $region3: #{tpu_custom_call.1} parent=1 // pred_check_branch
      %20 = sbr.rel (0) target = $region5
    $region4: #{tpu_custom_call.1} parent=1 // pred_region
      %s22 = ssub.s32 128, 128
      %23 = vsyncadd [#allocation3], %s22
      %s25 = sshll.u32 [#allocation2], 4
      %s26 = int_to_ptr.vmem [resolvable:$true] %s25
      %28 = dma.hbm_to_vmem [thread:$0]  %s0, 128, %s26, [#allocation3]
    $region5: #{tpu_custom_call.1} parent=1 // pred_fallthru
      _
    // Predicated region
    $region6: #{tpu_custom_call.1} parent=1 // pred_check
      _
    $region7: #{tpu_custom_call.1} parent=1 // pred_check_branch
      %30 = sbr.rel (0) target = $region9
    $region8: #{tpu_custom_call.1} parent=1 // pred_region
      %s32 = ssub.s32 128, 128
      %33 = vsyncadd [#allocation6], %s32
      %s35 = sshll.u32 [#allocation5], 4
      %s36 = int_to_ptr.vmem [resolvable:$true] %s35
      %38 = dma.hbm_to_vmem [thread:$0]  %s1, 128, %s36, [#allocation6]
    $region9: #{tpu_custom_call.1} parent=1 // pred_fallthru
      _
    // Predicated region
    $region10: #{tpu_custom_call.1} parent=1 // pred_check
      _
    $region11: #{tpu_custom_call.1} parent=1 // pred_check_branch
      %40 = sbr.rel (0) target = $region13
    $region12: #{tpu_custom_call.1} parent=1 // pred_region
      %s42 = ssub.s32 2048, 2048
      %43 = vsyncadd [#allocation6], %s42
      %s44 = sshll.u32 [#allocation7], 4
      %s45 = int_to_ptr.vmem [resolvable:$true] %s44
      %50 = dma.hbm_to_vmem [thread:$0]  %s2, 2048, %s45, [#allocation6], 64, 64, 4
    $region13: #{tpu_custom_call.1} parent=1 // pred_fallthru
      _
    // Predicated region
    $region14: #{tpu_custom_call.1} parent=1 // pred_check
      _
    $region15: #{tpu_custom_call.1} parent=1 // pred_check_branch
      %52 = sbr.rel (0) target = $region17
    $region16: #{tpu_custom_call.1} parent=1 // pred_region
      %s54 = ssub.s32 1024, 1024
      %55 = vsyncadd [#allocation9], %s54
      %s56 = sshll.u32 [#allocation8], 4
      %s57 = int_to_ptr.vmem [resolvable:$true] %s56
      %62 = dma.hbm_to_vmem [thread:$0]  %s3, 1024, %s57, [#allocation9], 64, 64, 4
    $region17: #{tpu_custom_call.1} parent=1 // pred_fallthru
      _
    // Predicated region
    $region18: #{tpu_custom_call.1} parent=1 // pred_check
      _
    $region19: #{tpu_custom_call.1} parent=1 // pred_check_branch
      %64 = sbr.rel (0) target = $region21
    $region20: #{tpu_custom_call.1} parent=1 // pred_region
      %s66 = ssub.s32 1024, 1024
      %67 = vsyncadd [#allocation9], %s66
      %s68 = sshll.u32 [#allocation10], 4
      %s69 = int_to_ptr.vmem [resolvable:$true] %s68
      %74 = dma.hbm_to_vmem [thread:$0]  %s4, 1024, %s69, [#allocation9], 64, 64, 4
    $region21: #{tpu_custom_call.1} parent=1 // pred_fallthru
      _
    // Predicated region
    $region22: #{tpu_custom_call.1} parent=1 // pred_check
      _
    $region23: #{tpu_custom_call.1} parent=1 // pred_check_branch
      %76 = sbr.rel (0) target = $region25
    $region24: #{tpu_custom_call.1} parent=1 // pred_region
      %s78 = ssub.s32 1024, 1024
      %79 = vsyncadd [#allocation12], %s78
      %s80 = sshll.u32 [#allocation11], 4
      %s81 = int_to_ptr.vmem [resolvable:$true] %s80
      %86 = dma.hbm_to_vmem [thread:$0]  %s5, 1024, %s81, [#allocation12], 64, 64, 4
    $region25: #{tpu_custom_call.1} parent=1 // pred_fallthru
      _
    // Predicated region
    $region26: #{tpu_custom_call.1} parent=1 // pred_check
      _
    $region27: #{tpu_custom_call.1} parent=1 // pred_check_branch
      %88 = sbr.rel (0) target = $region29
    $region28: #{tpu_custom_call.1} parent=1 // pred_region
      _
    $region29: #{tpu_custom_call.1} parent=1 // pred_fallthru
      _
    // Predicated region
    $region30: #{tpu_custom_call.1} parent=1 // pred_check
      _
    $region31: #{tpu_custom_call.1} parent=1 // pred_check_branch
      %90 = sbr.rel (0) target = $region33
    $region32: #{tpu_custom_call.1} parent=1 // pred_region
      %91 = dma.done [#allocation3], 128
    $region33: #{tpu_custom_call.1} parent=1 // pred_fallthru
      _
    // Predicated region
    $region34: #{tpu_custom_call.1} parent=1 // pred_check
      _
    $region35: #{tpu_custom_call.1} parent=1 // pred_check_branch
      %93 = sbr.rel (0) target = $region37
    $region36: #{tpu_custom_call.1} parent=1 // pred_region
      %94 = dma.done [#allocation6], 128
    $region37: #{tpu_custom_call.1} parent=1 // pred_fallthru
      _
    // Predicated region
    $region38: #{tpu_custom_call.1} parent=1 // pred_check
      _
    $region39: #{tpu_custom_call.1} parent=1 // pred_check_branch
      %96 = sbr.rel (0) target = $region41
    $region40: #{tpu_custom_call.1} parent=1 // pred_region
      %97 = dma.done [#allocation6], 2048
    $region41: #{tpu_custom_call.1} parent=1 // pred_fallthru
      _
    // Predicated region
    $region42: #{tpu_custom_call.1} parent=1 // pred_check
      _
    $region43: #{tpu_custom_call.1} parent=1 // pred_check_branch
      %99 = sbr.rel (0) target = $region45
    $region44: #{tpu_custom_call.1} parent=1 // pred_region
      %100 = dma.done [#allocation9], 1024
    $region45: #{tpu_custom_call.1} parent=1 // pred_fallthru
      _
    // Predicated region
    $region46: #{tpu_custom_call.1} parent=1 // pred_check
      _
    $region47: #{tpu_custom_call.1} parent=1 // pred_check_branch
      %102 = sbr.rel (0) target = $region49
    $region48: #{tpu_custom_call.1} parent=1 // pred_region
      %103 = dma.done [#allocation9], 1024
    $region49: #{tpu_custom_call.1} parent=1 // pred_fallthru
      _
    // Predicated region
    $region50: #{tpu_custom_call.1} parent=1 // pred_check
      _
    $region51: #{tpu_custom_call.1} parent=1 // pred_check_branch
      %105 = sbr.rel (0) target = $region53
    $region52: #{tpu_custom_call.1} parent=1 // pred_region
      %106 = dma.done [#allocation12], 1024
    $region53: #{tpu_custom_call.1} parent=1 // pred_fallthru
      _
    %v108 = vld [vmem:[#allocation2] sm:$0xff]
    %v109 = vld [vmem:[#allocation5] sm:$0xff]
    %110 = vadd.xlane.f32.xlu0 %v108
    %v111 = vpop.xlane.xlu0 %110
    %v112 = vrot.slane %v111, 4
    %v113 = vadd.f32 %v111, %v112
    %v114 = vrot.slane %v113, 2
    %v115 = vadd.f32 %v113, %v114
    %v116 = vrot.slane %v115, 1
    %v117 = vadd.f32 %v115, %v116
    %s118 = vtos %v117
    %119 = vadd.xlane.f32.xlu0 %v109
    %v120 = vpop.xlane.xlu0 %119
    %v121 = vrot.slane %v120, 4
    %v122 = vadd.f32 %v120, %v121
    %v123 = vrot.slane %v122, 2
    %v124 = vadd.f32 %v122, %v123
    %v125 = vrot.slane %v124, 1
    %v126 = vadd.f32 %v124, %v125
    %s127 = vtos %v126
    %s128 = sadd.f32 %s118, %s127
    %p129 = scmp.ne.f32.partialorder %s128, %s128
    %s130 = scalar_select %p129, 1, 0
    %s131 = scvt.s32.f32 %s130
    %v132 = vstv %s131
    %133 = vst [vmem:[#allocation13] sm:$0xff] %v132
    %v134 = vpack.c.bf16 %v108, %v108
    %v135 = vpack.c.bf16 %v109, %v109
    %v136 = vld [vmem:[#allocation7] sm:$0xf]
    %v137 = vld [vmem:[#allocation7 + $0x4] sm:$0xf]
    %v138 = vld [vmem:[#allocation7 + $0x8] sm:$0xf]
    %v139 = vld [vmem:[#allocation7 + $0xc] sm:$0xf]
    %v140 = vld [vmem:[#allocation7 + $0x10] sm:$0xf]
    %v141 = vld [vmem:[#allocation7 + $0x14] sm:$0xf]
    %v142 = vld [vmem:[#allocation7 + $0x18] sm:$0xf]
    %v143 = vld [vmem:[#allocation7 + $0x1c] sm:$0xf]
    %v144 = vld [vmem:[#allocation7 + $0x20] sm:$0xf]
    %v145 = vld [vmem:[#allocation7 + $0x24] sm:$0xf]
    %v146 = vld [vmem:[#allocation7 + $0x28] sm:$0xf]
    %v147 = vld [vmem:[#allocation7 + $0x2c] sm:$0xf]
    %v148 = vld [vmem:[#allocation7 + $0x30] sm:$0xf]
    %v149 = vld [vmem:[#allocation7 + $0x34] sm:$0xf]
    %v150 = vld [vmem:[#allocation7 + $0x38] sm:$0xf]
    %v151 = vld [vmem:[#allocation7 + $0x3c] sm:$0xf]
    %v152 = vld [vmem:[#allocation7 + $0x40] sm:$0xf]
    %v153 = vld [vmem:[#allocation7 + $0x44] sm:$0xf]
    %v154 = vld [vmem:[#allocation7 + $0x48] sm:$0xf]
    %v155 = vld [vmem:[#allocation7 + $0x4c] sm:$0xf]
    %v156 = vld [vmem:[#allocation7 + $0x50] sm:$0xf]
    %v157 = vld [vmem:[#allocation7 + $0x54] sm:$0xf]
    %v158 = vld [vmem:[#allocation7 + $0x58] sm:$0xf]
    %v159 = vld [vmem:[#allocation7 + $0x5c] sm:$0xf]
    %v160 = vld [vmem:[#allocation7 + $0x60] sm:$0xf]
    %v161 = vld [vmem:[#allocation7 + $0x64] sm:$0xf]
    %v162 = vld [vmem:[#allocation7 + $0x68] sm:$0xf]
    %v163 = vld [vmem:[#allocation7 + $0x6c] sm:$0xf]
    %v164 = vld [vmem:[#allocation7 + $0x70] sm:$0xf]
    %v165 = vld [vmem:[#allocation7 + $0x74] sm:$0xf]
    %v166 = vld [vmem:[#allocation7 + $0x78] sm:$0xf]
    %v167 = vld [vmem:[#allocation7 + $0x7c] sm:$0xf]
    %v168 = vld [vmem:[%s6] sm:$0x1]
    %v169 = vlaneseq
    %v170 = vshrl.u32 %v169, 7
    %v171 = vsub.s32 0, %v170
    %v172 = vrot.slane %v168, %v171
    %v205 = vunpack.c.l.b16 %v136
    %v206 = vunpack.c.l.b16 %v137
    %v207 = vunpack.c.l.b16 %v138
    %v208 = vunpack.c.l.b16 %v139
    %v209 = vunpack.c.l.b16 %v140
    %v210 = vunpack.c.l.b16 %v141
    %v211 = vunpack.c.l.b16 %v142
    %v212 = vunpack.c.l.b16 %v143
    %v213 = vunpack.c.l.b16 %v144
    %v214 = vunpack.c.l.b16 %v145
    %v215 = vunpack.c.l.b16 %v146
    %v216 = vunpack.c.l.b16 %v147
    %v217 = vunpack.c.l.b16 %v148
    %v218 = vunpack.c.l.b16 %v149
    %v219 = vunpack.c.l.b16 %v150
    %v220 = vunpack.c.l.b16 %v151
    %v221 = vunpack.c.l.b16 %v152
    %v222 = vunpack.c.l.b16 %v153
    %v223 = vunpack.c.l.b16 %v154
    %v224 = vunpack.c.l.b16 %v155
    %v225 = vunpack.c.l.b16 %v156
    %v226 = vunpack.c.l.b16 %v157
    %v227 = vunpack.c.l.b16 %v158
    %v228 = vunpack.c.l.b16 %v159
    %v229 = vunpack.c.l.b16 %v160
    %v230 = vunpack.c.l.b16 %v161
    %v231 = vunpack.c.l.b16 %v162
    %v232 = vunpack.c.l.b16 %v163
    %v233 = vunpack.c.l.b16 %v164
    %v234 = vunpack.c.l.b16 %v165
    %v235 = vunpack.c.l.b16 %v166
    %v236 = vunpack.c.l.b16 %v167
    %v237 = vpack.c.b16 %v206, %v205
    %v238 = vpack.c.b16 %v208, %v207
    %v239 = vpack.c.b16 %v210, %v209
    %v240 = vpack.c.b16 %v212, %v211
    %v241 = vpack.c.b16 %v214, %v213
    %v242 = vpack.c.b16 %v216, %v215
    %v243 = vpack.c.b16 %v218, %v217
    %v244 = vpack.c.b16 %v220, %v219
    %v245 = vpack.c.b16 %v222, %v221
    %v246 = vpack.c.b16 %v224, %v223
    %v247 = vpack.c.b16 %v226, %v225
    %v248 = vpack.c.b16 %v228, %v227
    %v249 = vpack.c.b16 %v230, %v229
    %v250 = vpack.c.b16 %v232, %v231
    %v251 = vpack.c.b16 %v234, %v233
    %v252 = vpack.c.b16 %v236, %v235
    %269 = vmatprep.subr.bf16.mxu0 0
    %270 = vmatpush1.bf16.msra.mxu0 %v237
    %271 = vmatprep.subr.bf16.mxu0 0
    %272 = vmatpush1.bf16.msra.mxu0 %v238
    %273 = vmatprep.subr.bf16.mxu0 0
    %274 = vmatpush1.bf16.msra.mxu0 %v239
    %275 = vmatprep.subr.bf16.mxu0 0
    %276 = vmatpush1.bf16.msra.mxu0 %v240
    %277 = vmatprep.subr.bf16.mxu0 0
    %278 = vmatpush1.bf16.msra.mxu0 %v241
    %279 = vmatprep.subr.bf16.mxu0 0
    %280 = vmatpush1.bf16.msra.mxu0 %v242
    %281 = vmatprep.subr.bf16.mxu0 0
    %282 = vmatpush1.bf16.msra.mxu0 %v243
    %283 = vmatprep.subr.bf16.mxu0 0
    %284 = vmatpush1.bf16.msra.mxu0 %v244
    %285 = vmatprep.subr.bf16.mxu0 0
    %286 = vmatpush1.bf16.msra.mxu0 %v245
    %287 = vmatprep.subr.bf16.mxu0 0
    %288 = vmatpush1.bf16.msra.mxu0 %v246
    %289 = vmatprep.subr.bf16.mxu0 0
    %290 = vmatpush1.bf16.msra.mxu0 %v247
    %291 = vmatprep.subr.bf16.mxu0 0
    %292 = vmatpush1.bf16.msra.mxu0 %v248
    %293 = vmatprep.subr.bf16.mxu0 0
    %294 = vmatpush1.bf16.msra.mxu0 %v249
    %295 = vmatprep.subr.bf16.mxu0 0
    %296 = vmatpush1.bf16.msra.mxu0 %v250
    %297 = vmatprep.subr.bf16.mxu0 0
    %298 = vmatpush1.bf16.msra.mxu0 %v251
    %299 = vmatprep.subr.bf16.mxu0 0
    %300 = vmatpush1.bf16.msra.mxu0 %v252
    %301 = vmatprep.mubr.bf16.mxu0 %v135
    %302 = vmatmul.mubr.bf16.gmra.mrb[0].mxu0 %v134
    %v303 = vpop.f32.mrb[0].mxu0
    %v304 = vadd.f32 %v172, %v303
    %v305 = vpop.f32.mrb[0].mxu0
    %v306 = vpop.f32.mrb[0].mxu0
    %v307 = vpop.f32.mrb[0].mxu0
    %308 = vdwg.mxu0
    %v309 = vtanh.pop %v304
    %v310 = vpack.c.bf16 %v309, %v309
    %v311 = vld [vmem:[#allocation8] sm:$0xf]
    %v312 = vld [vmem:[#allocation8 + $0x4] sm:$0xf]
    %v313 = vld [vmem:[#allocation8 + $0x8] sm:$0xf]
    %v314 = vld [vmem:[#allocation8 + $0xc] sm:$0xf]
    %v315 = vld [vmem:[#allocation8 + $0x10] sm:$0xf]
    %v316 = vld [vmem:[#allocation8 + $0x14] sm:$0xf]
    %v317 = vld [vmem:[#allocation8 + $0x18] sm:$0xf]
    %v318 = vld [vmem:[#allocation8 + $0x1c] sm:$0xf]
    %v319 = vld [vmem:[#allocation8 + $0x20] sm:$0xf]
    %v320 = vld [vmem:[#allocation8 + $0x24] sm:$0xf]
    %v321 = vld [vmem:[#allocation8 + $0x28] sm:$0xf]
    %v322 = vld [vmem:[#allocation8 + $0x2c] sm:$0xf]
    %v323 = vld [vmem:[#allocation8 + $0x30] sm:$0xf]
    %v324 = vld [vmem:[#allocation8 + $0x34] sm:$0xf]
    %v325 = vld [vmem:[#allocation8 + $0x38] sm:$0xf]
    %v326 = vld [vmem:[#allocation8 + $0x3c] sm:$0xf]
    %v327 = vld [vmem:[%s6 + $0x1] sm:$0x1]
    %v328 = vlaneseq
    %v329 = vshrl.u32 %v328, 7
    %v330 = vsub.s32 0, %v329
    %v331 = vrot.slane %v327, %v330
    %v348 = vunpack.c.l.b16 %v311
    %v349 = vunpack.c.l.b16 %v312
    %v350 = vunpack.c.l.b16 %v313
    %v351 = vunpack.c.l.b16 %v314
    %v352 = vunpack.c.l.b16 %v315
    %v353 = vunpack.c.l.b16 %v316
    %v354 = vunpack.c.l.b16 %v317
    %v355 = vunpack.c.l.b16 %v318
    %v356 = vunpack.c.l.b16 %v319
    %v357 = vunpack.c.l.b16 %v320
    %v358 = vunpack.c.l.b16 %v321
    %v359 = vunpack.c.l.b16 %v322
    %v360 = vunpack.c.l.b16 %v323
    %v361 = vunpack.c.l.b16 %v324
    %v362 = vunpack.c.l.b16 %v325
    %v363 = vunpack.c.l.b16 %v326
    %v364 = vpack.c.b16 %v349, %v348
    %v365 = vpack.c.b16 %v351, %v350
    %v366 = vpack.c.b16 %v353, %v352
    %v367 = vpack.c.b16 %v355, %v354
    %v368 = vpack.c.b16 %v357, %v356
    %v369 = vpack.c.b16 %v359, %v358
    %v370 = vpack.c.b16 %v361, %v360
    %v371 = vpack.c.b16 %v363, %v362
    %380 = vmatprep.subr.bf16.mxu0 0
    %381 = vmatpush1.bf16.msra.mxu0 %v364
    %382 = vmatprep.subr.bf16.mxu0 0
    %383 = vmatpush1.bf16.msra.mxu0 %v365
    %384 = vmatprep.subr.bf16.mxu0 0
    %385 = vmatpush1.bf16.msra.mxu0 %v366
    %386 = vmatprep.subr.bf16.mxu0 0
    %387 = vmatpush1.bf16.msra.mxu0 %v367
    %388 = vmatprep.subr.bf16.mxu0 0
    %389 = vmatpush1.bf16.msra.mxu0 %v368
    %390 = vmatprep.subr.bf16.mxu0 0
    %391 = vmatpush1.bf16.msra.mxu0 %v369
    %392 = vmatprep.subr.bf16.mxu0 0
    %393 = vmatpush1.bf16.msra.mxu0 %v370
    %394 = vmatprep.subr.bf16.mxu0 0
    %395 = vmatpush1.bf16.msra.mxu0 %v371
    %396 = vmatprep.subr.bf16.mxu0 0
    %397 = vmatpush1.bf16.msra.mxu0 0
    %398 = vmatprep.subr.bf16.mxu0 0
    %399 = vmatpush1.bf16.msra.mxu0 0
    %400 = vmatprep.subr.bf16.mxu0 0
    %401 = vmatpush1.bf16.msra.mxu0 0
    %402 = vmatprep.subr.bf16.mxu0 0
    %403 = vmatpush1.bf16.msra.mxu0 0
    %404 = vmatprep.subr.bf16.mxu0 0
    %405 = vmatpush1.bf16.msra.mxu0 0
    %406 = vmatprep.subr.bf16.mxu0 0
    %407 = vmatpush1.bf16.msra.mxu0 0
    %408 = vmatprep.subr.bf16.mxu0 0
    %409 = vmatpush1.bf16.msra.mxu0 0
    %410 = vmatprep.subr.bf16.mxu0 0
    %411 = vmatpush1.bf16.msra.mxu0 0
    %412 = vmatprep.mubr.bf16.mxu0 0
    %413 = vmatmul.mubr.bf16.gmra.mrb[0].mxu0 %v310
    %v414 = vpop.f32.mrb[0].mxu0
    %v415 = vadd.f32 %v331, %v414
    %v416 = vpop.f32.mrb[0].mxu0
    %v417 = vpop.f32.mrb[0].mxu0
    %v418 = vpop.f32.mrb[0].mxu0
    %419 = vdwg.mxu0
    %v420 = vtanh.pop %v415
    %v421 = vpack.c.bf16 %v420, %v420
    %v422 = vld [vmem:[#allocation10] sm:$0xf]
    %v423 = vld [vmem:[#allocation10 + $0x4] sm:$0xf]
    %v424 = vld [vmem:[#allocation10 + $0x8] sm:$0xf]
    %v425 = vld [vmem:[#allocation10 + $0xc] sm:$0xf]
    %v426 = vld [vmem:[#allocation10 + $0x10] sm:$0xf]
    %v427 = vld [vmem:[#allocation10 + $0x14] sm:$0xf]
    %v428 = vld [vmem:[#allocation10 + $0x18] sm:$0xf]
    %v429 = vld [vmem:[#allocation10 + $0x1c] sm:$0xf]
    %v430 = vld [vmem:[#allocation10 + $0x20] sm:$0xf]
    %v431 = vld [vmem:[#allocation10 + $0x24] sm:$0xf]
    %v432 = vld [vmem:[#allocation10 + $0x28] sm:$0xf]
    %v433 = vld [vmem:[#allocation10 + $0x2c] sm:$0xf]
    %v434 = vld [vmem:[#allocation10 + $0x30] sm:$0xf]
    %v435 = vld [vmem:[#allocation10 + $0x34] sm:$0xf]
    %v436 = vld [vmem:[#allocation10 + $0x38] sm:$0xf]
    %v437 = vld [vmem:[#allocation10 + $0x3c] sm:$0xf]
    %v438 = vld [vmem:[%s6 + $0x2] sm:$0x1]
    %v439 = vlaneseq
    %v440 = vshrl.u32 %v439, 7
    %v441 = vsub.s32 0, %v440
    %v442 = vrot.slane %v438, %v441
    %v459 = vunpack.c.l.b16 %v422
    %v460 = vunpack.c.l.b16 %v423
    %v461 = vunpack.c.l.b16 %v424
    %v462 = vunpack.c.l.b16 %v425
    %v463 = vunpack.c.l.b16 %v426
    %v464 = vunpack.c.l.b16 %v427
    %v465 = vunpack.c.l.b16 %v428
    %v466 = vunpack.c.l.b16 %v429
    %v467 = vunpack.c.l.b16 %v430
    %v468 = vunpack.c.l.b16 %v431
    %v469 = vunpack.c.l.b16 %v432
    %v470 = vunpack.c.l.b16 %v433
    %v471 = vunpack.c.l.b16 %v434
    %v472 = vunpack.c.l.b16 %v435
    %v473 = vunpack.c.l.b16 %v436
    %v474 = vunpack.c.l.b16 %v437
    %v475 = vpack.c.b16 %v460, %v459
    %v476 = vpack.c.b16 %v462, %v461
    %v477 = vpack.c.b16 %v464, %v463
    %v478 = vpack.c.b16 %v466, %v465
    %v479 = vpack.c.b16 %v468, %v467
    %v480 = vpack.c.b16 %v470, %v469
    %v481 = vpack.c.b16 %v472, %v471
    %v482 = vpack.c.b16 %v474, %v473
    %491 = vmatprep.subr.bf16.mxu0 0
    %492 = vmatpush1.bf16.msra.mxu0 %v475
    %493 = vmatprep.subr.bf16.mxu0 0
    %494 = vmatpush1.bf16.msra.mxu0 %v476
    %495 = vmatprep.subr.bf16.mxu0 0
    %496 = vmatpush1.bf16.msra.mxu0 %v477
    %497 = vmatprep.subr.bf16.mxu0 0
    %498 = vmatpush1.bf16.msra.mxu0 %v478
    %499 = vmatprep.subr.bf16.mxu0 0
    %500 = vmatpush1.bf16.msra.mxu0 %v479
    %501 = vmatprep.subr.bf16.mxu0 0
    %502 = vmatpush1.bf16.msra.mxu0 %v480
    %503 = vmatprep.subr.bf16.mxu0 0
    %504 = vmatpush1.bf16.msra.mxu0 %v481
    %505 = vmatprep.subr.bf16.mxu0 0
    %506 = vmatpush1.bf16.msra.mxu0 %v482
    %507 = vmatprep.subr.bf16.mxu0 0
    %508 = vmatpush1.bf16.msra.mxu0 0
    %509 = vmatprep.subr.bf16.mxu0 0
    %510 = vmatpush1.bf16.msra.mxu0 0
    %511 = vmatprep.subr.bf16.mxu0 0
    %512 = vmatpush1.bf16.msra.mxu0 0
    %513 = vmatprep.subr.bf16.mxu0 0
    %514 = vmatpush1.bf16.msra.mxu0 0
    %515 = vmatprep.subr.bf16.mxu0 0
    %516 = vmatpush1.bf16.msra.mxu0 0
    %517 = vmatprep.subr.bf16.mxu0 0
    %518 = vmatpush1.bf16.msra.mxu0 0
    %519 = vmatprep.subr.bf16.mxu0 0
    %520 = vmatpush1.bf16.msra.mxu0 0
    %521 = vmatprep.subr.bf16.mxu0 0
    %522 = vmatpush1.bf16.msra.mxu0 0
    %523 = vmatprep.mubr.bf16.mxu0 0
    %524 = vmatmul.mubr.bf16.gmra.mrb[0].mxu0 %v421
    %v525 = vpop.f32.mrb[0].mxu0
    %v526 = vadd.f32 %v442, %v525
    %v527 = vpop.f32.mrb[0].mxu0
    %v528 = vpop.f32.mrb[0].mxu0
    %v529 = vpop.f32.mrb[0].mxu0
    %530 = vdwg.mxu0
    %v531 = vtanh.pop %v526
    %v532 = vpack.c.bf16 %v531, %v531
    %v533 = vld [vmem:[#allocation11] sm:$0xf]
    %v534 = vld [vmem:[#allocation11 + $0x4] sm:$0xf]
    %v535 = vld [vmem:[#allocation11 + $0x8] sm:$0xf]
    %v536 = vld [vmem:[#allocation11 + $0xc] sm:$0xf]
    %v537 = vld [vmem:[#allocation11 + $0x10] sm:$0xf]
    %v538 = vld [vmem:[#allocation11 + $0x14] sm:$0xf]
    %v539 = vld [vmem:[#allocation11 + $0x18] sm:$0xf]
    %v540 = vld [vmem:[#allocation11 + $0x1c] sm:$0xf]
    %v541 = vld [vmem:[#allocation11 + $0x20] sm:$0xf]
    %v542 = vld [vmem:[#allocation11 + $0x24] sm:$0xf]
    %v543 = vld [vmem:[#allocation11 + $0x28] sm:$0xf]
    %v544 = vld [vmem:[#allocation11 + $0x2c] sm:$0xf]
    %v545 = vld [vmem:[#allocation11 + $0x30] sm:$0xf]
    %v546 = vld [vmem:[#allocation11 + $0x34] sm:$0xf]
    %v547 = vld [vmem:[#allocation11 + $0x38] sm:$0xf]
    %v548 = vld [vmem:[#allocation11 + $0x3c] sm:$0xf]
    %v549 = vld [vmem:[%s6 + $0x3] sm:$0x1]
    %v550 = vlaneseq
    %v551 = vshrl.u32 %v550, 7
    %v552 = vsub.s32 0, %v551
    %v553 = vrot.slane %v549, %v552
    %v570 = vunpack.c.l.b16 %v533
    %v571 = vunpack.c.l.b16 %v534
    %v572 = vunpack.c.l.b16 %v535
    %v573 = vunpack.c.l.b16 %v536
    %v574 = vunpack.c.l.b16 %v537
    %v575 = vunpack.c.l.b16 %v538
    %v576 = vunpack.c.l.b16 %v539
    %v577 = vunpack.c.l.b16 %v540
    %v578 = vunpack.c.l.b16 %v541
    %v579 = vunpack.c.l.b16 %v542
    %v580 = vunpack.c.l.b16 %v543
    %v581 = vunpack.c.l.b16 %v544
    %v582 = vunpack.c.l.b16 %v545
    %v583 = vunpack.c.l.b16 %v546
    %v584 = vunpack.c.l.b16 %v547
    %v585 = vunpack.c.l.b16 %v548
    %v586 = vpack.c.b16 %v571, %v570
    %v587 = vpack.c.b16 %v573, %v572
    %v588 = vpack.c.b16 %v575, %v574
    %v589 = vpack.c.b16 %v577, %v576
    %v590 = vpack.c.b16 %v579, %v578
    %v591 = vpack.c.b16 %v581, %v580
    %v592 = vpack.c.b16 %v583, %v582
    %v593 = vpack.c.b16 %v585, %v584
    %602 = vmatprep.subr.bf16.mxu0 0
    %603 = vmatpush1.bf16.msra.mxu0 %v586
    %604 = vmatprep.subr.bf16.mxu0 0
    %605 = vmatpush1.bf16.msra.mxu0 %v587
    %606 = vmatprep.subr.bf16.mxu0 0
    %607 = vmatpush1.bf16.msra.mxu0 %v588
    %608 = vmatprep.subr.bf16.mxu0 0
    %609 = vmatpush1.bf16.msra.mxu0 %v589
    %610 = vmatprep.subr.bf16.mxu0 0
    %611 = vmatpush1.bf16.msra.mxu0 %v590
    %612 = vmatprep.subr.bf16.mxu0 0
    %613 = vmatpush1.bf16.msra.mxu0 %v591
    %614 = vmatprep.subr.bf16.mxu0 0
    %615 = vmatpush1.bf16.msra.mxu0 %v592
    %616 = vmatprep.subr.bf16.mxu0 0
    %617 = vmatpush1.bf16.msra.mxu0 %v593
    %618 = vmatprep.subr.bf16.mxu0 0
    %619 = vmatpush1.bf16.msra.mxu0 0
    %620 = vmatprep.subr.bf16.mxu0 0
    %621 = vmatpush1.bf16.msra.mxu0 0
    %622 = vmatprep.subr.bf16.mxu0 0
    %623 = vmatpush1.bf16.msra.mxu0 0
    %624 = vmatprep.subr.bf16.mxu0 0
    %625 = vmatpush1.bf16.msra.mxu0 0
    %626 = vmatprep.subr.bf16.mxu0 0
    %627 = vmatpush1.bf16.msra.mxu0 0
    %628 = vmatprep.subr.bf16.mxu0 0
    %629 = vmatpush1.bf16.msra.mxu0 0
    %630 = vmatprep.subr.bf16.mxu0 0
    %631 = vmatpush1.bf16.msra.mxu0 0
    %632 = vmatprep.subr.bf16.mxu0 0
    %633 = vmatpush1.bf16.msra.mxu0 0
    %634 = vmatprep.mubr.bf16.mxu0 0
    %635 = vmatmul.mubr.bf16.gmra.mrb[0].mxu0 %v532
    %v636 = vpop.f32.mrb[0].mxu0
    %v637 = vadd.f32 %v553, %v636
    %v638 = vpop.f32.mrb[0].mxu0
    %v639 = vpop.f32.mrb[0].mxu0
    %v640 = vpop.f32.mrb[0].mxu0
    %641 = vdwg.mxu0
    %vm642 = vcmask 15360
    %643 = vst.msk [vmem:[%s7] sm:$0xff] %vm642, %v637
    // Predicated region
    $region54: #{tpu_custom_call.1} parent=1 // pred_check
      _
    $region55: #{tpu_custom_call.1} parent=1 // pred_check_branch
      %645 = sbr.rel (0) target = $region57
    $region56: #{tpu_custom_call.1} parent=1 // pred_region
      _
    $region57: #{tpu_custom_call.1} parent=1 // pred_fallthru
      _
    // Predicated region
    $region58: #{tpu_custom_call.1} parent=1 // pred_check
      _
    $region59: #{tpu_custom_call.1} parent=1 // pred_check_branch
      %647 = sbr.rel (0) target = $region61
    $region60: #{tpu_custom_call.1} parent=1 // pred_region
      %s649 = ssub.s32 128, 128
      %650 = vsyncadd [#allocation4], %s649
      %s652 = sshll.u32 [#allocation13], 4
      %s653 = int_to_ptr.vmem [resolvable:$true] %s652
      %655 = dma.vmem_to_hbm [thread:$0]  %s653, 128, %s8, [#allocation4]
    $region61: #{tpu_custom_call.1} parent=1 // pred_fallthru
      _
    // Predicated region
    $region62: #{tpu_custom_call.1} parent=1 // pred_check
      _
    $region63: #{tpu_custom_call.1} parent=1 // pred_check_branch
      %657 = sbr.rel (0) target = $region65
    $region64: #{tpu_custom_call.1} parent=1 // pred_region
      _
    $region65: #{tpu_custom_call.1} parent=1 // pred_fallthru
      _
    // Predicated region
    $region66: #{tpu_custom_call.1} parent=1 // pred_check
      _
    $region67: #{tpu_custom_call.1} parent=1 // pred_check_branch
      %659 = sbr.rel (0) target = $region69
    $region68: #{tpu_custom_call.1} parent=1 // pred_region
      %660 = dma.done [#allocation4], 128
    $region69: #{tpu_custom_call.1} parent=1 // pred_fallthru
      _
    %661 = vsyncpa [#allocation3], 1
    %662 = vsyncpa [#allocation6], 1
    %663 = vsyncpa [#allocation9], 1
    %664 = vsyncpa [#allocation12], 1
    %665 = vsyncpa [#allocation4], 1

</llo_original>
